<compile_context>
chip_gen: v7x
topology: tpu7x:2x2x1
jax: 0.10.0
libtpu: 0.0.40
codegen_flags: <defaults>
</compile_context>

<pallas_src>
import functools

import jax
import jax.numpy as jnp
from jax.experimental import pallas as pl
from jax.experimental.pallas import tpu as pltpu

_LANE = 128
_SUBLANE = 8
_S2_MAX = 8192                            # max sub-row width (lanes) -> unroll <= 64
_TN_MAX = 128                             # rows per block cap (register pressure)
_TARGET_BLOCK_BYTES = 2 * 1024 * 1024     # per-input, per-block DMA target
_LOGIT_PAD = -30.0                        # sigmoid(-30) ~ 9e-14 -> contributes ~0


def _round_up(x, m):
    return -(-x // m) * m


def _cdiv(a, b):
    return -(-a // b)


def _dice_kernel(lg_ref, tg_ref, num_ref, den_ref, num_acc, den_acc, *, ngroups):
    """One grid step reduces a (tn, S2) block of logits / targets.

    lg_ref  : (tn, S2)  logits block (native dtype)
    tg_ref  : (tn, S2)  targets block (native dtype)
    num_ref : (tn, 1)   per-sub-row sum(min(p, t))      (factor 2 in epilogue)
    den_ref : (tn, 1)   per-sub-row sum(p + t)
    num_acc : (tn, 128) f32 lane-dense accumulator (VMEM scratch)
    den_acc : (tn, 128) f32 lane-dense accumulator (VMEM scratch)
    """
    num_acc[...] = jnp.zeros(num_acc.shape, num_acc.dtype)
    den_acc[...] = jnp.zeros(den_acc.shape, den_acc.dtype)

    # Fold the S2 lanes 128 at a time with VPU adds only: no per-group XLU
    # cross-lane reduce and no sub-128-lane stores inside the inner loop.
    for g in range(ngroups):
        lo = g * _LANE
        x = lg_ref[:, lo:lo + _LANE].astype(jnp.float32)
        t = tg_ref[:, lo:lo + _LANE].astype(jnp.float32)
        # sigmoid(x) == 0.5 * tanh(0.5 * x) + 0.5  -> a single EUP push/vreg.
        p = 0.5 * jnp.tanh(0.5 * x) + 0.5
        # min-trick: p + t - |p - t| == 2 * min(p, t); the 2 is applied later.
        num_acc[...] += jnp.minimum(p, t)
        den_acc[...] += p + t

    # One cross-lane reduce per block, amortized over ngroups lane groups.
    num_ref[...] = num_acc[...].sum(axis=-1, keepdims=True)
    den_ref[...] = den_acc[...].sum(axis=-1, keepdims=True)


@functools.partial(jax.jit, static_argnames=("reduction",))
def dice_loss_pallas(logits, targets, class_weight=None, reduction="mean"):
    B, C, H, W = logits.shape
    N = B * C
    S = H * W

    lg = logits.reshape(N, S)
    tg = targets.reshape(N, S)

    itemsize = max(lg.dtype.itemsize, tg.dtype.itemsize)

    # ---- spatial-into-rows folding (all static under jit) -------------------
    if _round_up(S, _LANE) <= _S2_MAX:
        F = 1
        S2 = _round_up(S, _LANE)
    else:
        F = _cdiv(S, _S2_MAX)
        S2 = _round_up(_cdiv(S, F), _LANE)
    S_pad = F * S2
    N2 = N * F
    ngroups = S2 // _LANE

    # ---- row blocking: ~2 MiB / input block, near-equal split, >=2 blocks ---
    tn_cap = max(_SUBLANE,
                 min(_TN_MAX,
                     (_TARGET_BLOCK_BYTES // (S2 * itemsize)) // _SUBLANE * _SUBLANE))
    row_blocks = _cdiv(N2, tn_cap)
    if row_blocks < 2 and N2 >= 2 * _SUBLANE:
        row_blocks = 2                    # keep both v7x TensorCores busy
    tn = _round_up(_cdiv(N2, row_blocks), _SUBLANE)
    row_blocks = _cdiv(N2, tn)
    N2_pad = row_blocks * tn

    # ---- padding: logits -> -30 (sigmoid ~ 1e-13), targets -> 0 -------------
    if S_pad != S:
        lg = jnp.pad(lg, ((0, 0), (0, S_pad - S)), constant_values=_LOGIT_PAD)
        tg = jnp.pad(tg, ((0, 0), (0, S_pad - S)), constant_values=0)
    lg = lg.reshape(N2, S2)
    tg = tg.reshape(N2, S2)
    if N2_pad != N2:
        lg = jnp.pad(lg, ((0, N2_pad - N2), (0, 0)), constant_values=_LOGIT_PAD)
        tg = jnp.pad(tg, ((0, N2_pad - N2), (0, 0)), constant_values=0)

    kernel = functools.partial(_dice_kernel, ngroups=ngroups)

    num_pad, den_pad = pl.pallas_call(
        kernel,
        out_shape=(
            jax.ShapeDtypeStruct((N2_pad, 1), jnp.float32),
            jax.ShapeDtypeStruct((N2_pad, 1), jnp.float32),
        ),
        grid_spec=pltpu.PrefetchScalarGridSpec(
            num_scalar_prefetch=0,
            grid=(row_blocks,),
            in_specs=[
                pl.BlockSpec((tn, S2), lambda i: (i, 0)),   # logits block
                pl.BlockSpec((tn, S2), lambda i: (i, 0)),   # targets block
            ],
            out_specs=[
                pl.BlockSpec((tn, 1), lambda i: (i, 0)),    # numerator partial
                pl.BlockSpec((tn, 1), lambda i: (i, 0)),    # denominator partial
            ],
            scratch_shapes=[
                pltpu.VMEM((tn, _LANE), jnp.float32),
                pltpu.VMEM((tn, _LANE), jnp.float32),
            ],
        ),
        compiler_params=pltpu.CompilerParams(
            dimension_semantics=("parallel",),
            vmem_limit_bytes=32 * 1024 * 1024,
        ),
    )(lg, tg)

    # ---- tiny JAX epilogue over B*C (x F) scalars ---------------------------
    num = num_pad[:N2, 0].reshape(N, F).sum(axis=-1)
    den = den_pad[:N2, 0].reshape(N, F).sum(axis=-1)
    dice = (2.0 * num / den).reshape(B, C)
    if class_weight is not None:
        dice = dice * jnp.asarray(class_weight, jnp.float32)[None, :]
    loss = 1.0 - dice

    if reduction == "none":
        return loss
    elif reduction == "sum":
        return loss.sum()
    else:
        return loss.mean()


def dice_loss_ref(logits, targets, class_weight=None, reduction="mean"):
    """Pure-JAX reference mirroring the PyTorch dice_loss (f32 math)."""
    B, C = logits.shape[0], logits.shape[1]
    preds = jax.nn.sigmoid(logits.astype(jnp.float32)).reshape(B, C, -1)
    tgts = targets.astype(jnp.float32).reshape(B, C, -1)
    numerator = (preds + tgts - jnp.abs(preds - tgts)).sum(-1)
    denominator = (preds + tgts).sum(-1)
    dice = numerator / denominator
    if class_weight is not None:
        dice = dice * class_weight[None, :]
    loss = 1.0 - dice
    if reduction == "none":
        return loss
    elif reduction == "sum":
        return loss.sum()
    else:
        return loss.mean()


if __name__ == "__main__":
    # Case 1: module-sized f32 input, mean reduction.
    B, C, H, W = 2, 4, 16, 16
    k_lg, k_tg = jax.random.split(jax.random.PRNGKey(0))
    logits = jax.random.normal(k_lg, (B, C, H, W), dtype=jnp.float32)
    targets = jax.random.uniform(k_tg, (B, C, H, W), dtype=jnp.float32)
    class_weight = 0.5 + 0.1 * jnp.arange(C, dtype=jnp.float32)

    out = jax.block_until_ready(
        dice_loss_pallas(logits, targets, class_weight, reduction="mean"))
    ref = dice_loss_ref(logits, targets, class_weight, reduction="mean")
    assert jnp.allclose(out, ref, atol=1e-5, rtol=1e-5), (out, ref)

    # Case 2: ragged spatial extent (S % 128 != 0) + bf16 inputs (no wrapper
    # upcast), exercising the lane-padding path; reduction='none'.
    B2, C2, H2, W2 = 2, 4, 7, 9
    k3, k4 = jax.random.split(jax.random.PRNGKey(1))
    logits2 = jax.random.normal(k3, (B2, C2, H2, W2), dtype=jnp.bfloat16)
    targets2 = jax.random.uniform(k4, (B2, C2, H2, W2), dtype=jnp.bfloat16)
    cw2 = jnp.ones((C2,), jnp.float32)

    out2 = jax.block_until_ready(
        dice_loss_pallas(logits2, targets2, cw2, reduction="none"))
    ref2 = dice_loss_ref(logits2, targets2, cw2, reduction="none")
    assert jnp.allclose(out2, ref2, atol=1e-4, rtol=1e-4), (out2, ref2)

    # Case 3: S > 8192 exercises spatial-into-rows folding (F > 1) plus the
    # >=2 row-block split; reduction='sum'.
    B3, C3, H3, W3 = 2, 4, 97, 97
    k5, k6 = jax.random.split(jax.random.PRNGKey(2))
    logits3 = jax.random.normal(k5, (B3, C3, H3, W3), dtype=jnp.float32)
    targets3 = jax.random.uniform(k6, (B3, C3, H3, W3), dtype=jnp.float32)
    cw3 = 0.25 + 0.25 * jnp.arange(C3, dtype=jnp.float32)

    out3 = jax.block_until_ready(
        dice_loss_pallas(logits3, targets3, cw3, reduction="sum"))
    ref3 = dice_loss_ref(logits3, targets3, cw3, reduction="sum")
    assert jnp.allclose(out3, ref3, atol=1e-4, rtol=1e-5), (out3, ref3)

    print("KERNEL_OK")
</pallas_src>

<mosaic_0001>
module attributes {stable_mosaic.version = 11 : i64} {
  func.func @_dice_kernel(%arg0: i32, %arg1: memref<8x256xf32, #tpu.memory_space<vmem>>, %arg2: memref<8x256xf32, #tpu.memory_space<vmem>>, %arg3: memref<8x1xf32, #tpu.memory_space<vmem>>, %arg4: memref<8x1xf32, #tpu.memory_space<vmem>>, %arg5: memref<8x128xf32, #tpu.memory_space<vmem>>, %arg6: memref<8x128xf32, #tpu.memory_space<vmem>>) attributes {dimension_semantics = [#tpu.dimension_semantics<parallel>], iteration_bounds = array<i64: 1>, scalar_prefetch = 0 : i64, scratch_operands = 2 : i64, tpu.core_type = #tpu.core_type<tc>, window_params = [{transform_indices = @transform_0, window_bounds = array<i64: 8, 256>}, {transform_indices = @transform_1, window_bounds = array<i64: 8, 256>}, {transform_indices = @transform_2, window_bounds = array<i64: 8, 1>}, {transform_indices = @transform_3, window_bounds = array<i64: 8, 1>}]} {
    %cst = arith.constant 0.000000e+00 : f32
    %0 = vector.broadcast %cst : f32 to vector<8x128xf32>
    %c0 = arith.constant 0 : index
    %c0_0 = arith.constant 0 : index
    %1 = vector.load %arg5[%c0, %c0_0] : memref<8x128xf32, #tpu.memory_space<vmem>>, vector<8x128xf32>
    tpu.vector_store %arg5[%c0, %c0_0], %0 {strides = array<i32>} : memref<8x128xf32, #tpu.memory_space<vmem>>, vector<8x128xf32>,
    %cst_1 = arith.constant 0.000000e+00 : f32
    %2 = vector.broadcast %cst_1 : f32 to vector<8x128xf32>
    %c0_2 = arith.constant 0 : index
    %c0_3 = arith.constant 0 : index
    %3 = vector.load %arg6[%c0_2, %c0_3] : memref<8x128xf32, #tpu.memory_space<vmem>>, vector<8x128xf32>
    tpu.vector_store %arg6[%c0_2, %c0_3], %2 {strides = array<i32>} : memref<8x128xf32, #tpu.memory_space<vmem>>, vector<8x128xf32>,
    %c0_4 = arith.constant 0 : index
    %c0_5 = arith.constant 0 : index
    %4 = vector.load %arg1[%c0_4, %c0_5] : memref<8x256xf32, #tpu.memory_space<vmem>>, vector<8x128xf32>
    %c0_6 = arith.constant 0 : index
    %c0_7 = arith.constant 0 : index
    %5 = vector.load %arg2[%c0_6, %c0_7] : memref<8x256xf32, #tpu.memory_space<vmem>>, vector<8x128xf32>
    %cst_8 = arith.constant 5.000000e-01 : f32
    %6 = vector.broadcast %cst_8 : f32 to vector<8x128xf32>
    %7 = arith.mulf %6, %4 : vector<8x128xf32>
    %8 = math.tanh %7 : vector<8x128xf32>
    %cst_9 = arith.constant 5.000000e-01 : f32
    %9 = vector.broadcast %cst_9 : f32 to vector<8x128xf32>
    %10 = arith.mulf %9, %8 : vector<8x128xf32>
    %cst_10 = arith.constant 5.000000e-01 : f32
    %11 = vector.broadcast %cst_10 : f32 to vector<8x128xf32>
    %12 = arith.addf %10, %11 : vector<8x128xf32>
    %c0_11 = arith.constant 0 : index
    %c0_12 = arith.constant 0 : index
    %13 = vector.load %arg5[%c0_11, %c0_12] : memref<8x128xf32, #tpu.memory_space<vmem>>, vector<8x128xf32>
    %14 = arith.minimumf %12, %5 : vector<8x128xf32>
    %15 = arith.addf %13, %14 : vector<8x128xf32>
    %c0_13 = arith.constant 0 : index
    %c0_14 = arith.constant 0 : index
    %16 = vector.load %arg5[%c0_13, %c0_14] : memref<8x128xf32, #tpu.memory_space<vmem>>, vector<8x128xf32>
    tpu.vector_store %arg5[%c0_13, %c0_14], %15 {strides = array<i32>} : memref<8x128xf32, #tpu.memory_space<vmem>>, vector<8x128xf32>,
    %c0_15 = arith.constant 0 : index
    %c0_16 = arith.constant 0 : index
    %17 = vector.load %arg6[%c0_15, %c0_16] : memref<8x128xf32, #tpu.memory_space<vmem>>, vector<8x128xf32>
    %18 = arith.addf %12, %5 : vector<8x128xf32>
    %19 = arith.addf %17, %18 : vector<8x128xf32>
    %c0_17 = arith.constant 0 : index
    %c0_18 = arith.constant 0 : index
    %20 = vector.load %arg6[%c0_17, %c0_18] : memref<8x128xf32, #tpu.memory_space<vmem>>, vector<8x128xf32>
    tpu.vector_store %arg6[%c0_17, %c0_18], %19 {strides = array<i32>} : memref<8x128xf32, #tpu.memory_space<vmem>>, vector<8x128xf32>,
    %c0_19 = arith.constant 0 : index
    %c128 = arith.constant 128 : index
    %21 = vector.load %arg1[%c0_19, %c128] : memref<8x256xf32, #tpu.memory_space<vmem>>, vector<8x128xf32>
    %c0_20 = arith.constant 0 : index
    %c128_21 = arith.constant 128 : index
    %22 = vector.load %arg2[%c0_20, %c128_21] : memref<8x256xf32, #tpu.memory_space<vmem>>, vector<8x128xf32>
    %cst_22 = arith.constant 5.000000e-01 : f32
    %23 = vector.broadcast %cst_22 : f32 to vector<8x128xf32>
    %24 = arith.mulf %23, %21 : vector<8x128xf32>
    %25 = math.tanh %24 : vector<8x128xf32>
    %cst_23 = arith.constant 5.000000e-01 : f32
    %26 = vector.broadcast %cst_23 : f32 to vector<8x128xf32>
    %27 = arith.mulf %26, %25 : vector<8x128xf32>
    %cst_24 = arith.constant 5.000000e-01 : f32
    %28 = vector.broadcast %cst_24 : f32 to vector<8x128xf32>
    %29 = arith.addf %27, %28 : vector<8x128xf32>
    %c0_25 = arith.constant 0 : index
    %c0_26 = arith.constant 0 : index
    %30 = vector.load %arg5[%c0_25, %c0_26] : memref<8x128xf32, #tpu.memory_space<vmem>>, vector<8x128xf32>
    %31 = arith.minimumf %29, %22 : vector<8x128xf32>
    %32 = arith.addf %30, %31 : vector<8x128xf32>
    %c0_27 = arith.constant 0 : index
    %c0_28 = arith.constant 0 : index
    %33 = vector.load %arg5[%c0_27, %c0_28] : memref<8x128xf32, #tpu.memory_space<vmem>>, vector<8x128xf32>
    tpu.vector_store %arg5[%c0_27, %c0_28], %32 {strides = array<i32>} : memref<8x128xf32, #tpu.memory_space<vmem>>, vector<8x128xf32>,
    %c0_29 = arith.constant 0 : index
    %c0_30 = arith.constant 0 : index
    %34 = vector.load %arg6[%c0_29, %c0_30] : memref<8x128xf32, #tpu.memory_space<vmem>>, vector<8x128xf32>
    %35 = arith.addf %29, %22 : vector<8x128xf32>
    %36 = arith.addf %34, %35 : vector<8x128xf32>
    %c0_31 = arith.constant 0 : index
    %c0_32 = arith.constant 0 : index
    %37 = vector.load %arg6[%c0_31, %c0_32] : memref<8x128xf32, #tpu.memory_space<vmem>>, vector<8x128xf32>
    tpu.vector_store %arg6[%c0_31, %c0_32], %36 {strides = array<i32>} : memref<8x128xf32, #tpu.memory_space<vmem>>, vector<8x128xf32>,
    %c0_33 = arith.constant 0 : index
    %c0_34 = arith.constant 0 : index
    %38 = vector.load %arg5[%c0_33, %c0_34] : memref<8x128xf32, #tpu.memory_space<vmem>>, vector<8x128xf32>
    %cst_35 = arith.constant dense<0.000000e+00> : vector<8xf32>
    %39 = vector.multi_reduction <add>, %38, %cst_35 [1] : vector<8x128xf32> to vector<8xf32>
    %40 = vector.shape_cast %39 : vector<8xf32> to vector<8x1xf32>
    %c0_36 = arith.constant 0 : index
    %c0_37 = arith.constant 0 : index
    %41 = vector.load %arg3[%c0_36, %c0_37] : memref<8x1xf32, #tpu.memory_space<vmem>>, vector<8x1xf32>
    tpu.vector_store %arg3[%c0_36, %c0_37], %40 {strides = array<i32>} : memref<8x1xf32, #tpu.memory_space<vmem>>, vector<8x1xf32>,
    %c0_38 = arith.constant 0 : index
    %c0_39 = arith.constant 0 : index
    %42 = vector.load %arg6[%c0_38, %c0_39] : memref<8x128xf32, #tpu.memory_space<vmem>>, vector<8x128xf32>
    %cst_40 = arith.constant dense<0.000000e+00> : vector<8xf32>
    %43 = vector.multi_reduction <add>, %42, %cst_40 [1] : vector<8x128xf32> to vector<8xf32>
    %44 = vector.shape_cast %43 : vector<8xf32> to vector<8x1xf32>
    %c0_41 = arith.constant 0 : index
    %c0_42 = arith.constant 0 : index
    %45 = vector.load %arg4[%c0_41, %c0_42] : memref<8x1xf32, #tpu.memory_space<vmem>>, vector<8x1xf32>
    tpu.vector_store %arg4[%c0_41, %c0_42], %44 {strides = array<i32>} : memref<8x1xf32, #tpu.memory_space<vmem>>, vector<8x1xf32>,
    return
  }
  func.func @transform_0(%arg0: i32) -> (i32, i32) {
    %c0_i32 = arith.constant 0 : i32
    %c0_i32_0 = arith.constant 0 : i32
    return %arg0, %c0_i32 : i32, i32
  }
  func.func @transform_1(%arg0: i32) -> (i32, i32) {
    %c0_i32 = arith.constant 0 : i32
    %c0_i32_0 = arith.constant 0 : i32
    return %arg0, %c0_i32 : i32, i32
  }
  func.func @transform_2(%arg0: i32) -> (i32, i32) {
    %c0_i32 = arith.constant 0 : i32
    %c0_i32_0 = arith.constant 0 : i32
    return %arg0, %c0_i32 : i32, i32
  }
  func.func @transform_3(%arg0: i32) -> (i32, i32) {
    %c0_i32 = arith.constant 0 : i32
    %c0_i32_0 = arith.constant 0 : i32
    return %arg0, %c0_i32 : i32, i32
  }
}

</mosaic_0001>

<llo_original>
// kernel: dice_loss_pallas.1
$region0: #{dice_loss_pallas.1}
  #allocation0 [shape = 'u32[]', space=smem, size = 0x4, offset = 0x4, fixed_abs, tag = 'smem constant byte address 0x4 - core index']
  #allocation1 [shape = 'u32[144,128]{1,0:T(1,128)}', space=vmem, size = 0x12000, scoped, tag = 'internal scratch']
  #allocation2 [shape = 'f32[8,128]{1,0:T(8,128)}', space=vmem, size = 0x1000, scoped, tag = 'scratch operand']
  #allocation3 [shape = 'f32[8,128]{1,0:T(8,128)}', space=vmem, size = 0x1000, scoped, tag = 'scratch operand']
  %s0 = inlined_call_operand.vmem [shape: f32[8,256], index: 0, kind: input, shape index: {}]
  %s1 = inlined_call_operand.vmem [shape: f32[8,256], index: 1, kind: input, shape index: {}]
  %s2 = inlined_call_operand.vmem [shape: f32[8,1], index: 2, kind: output, shape index: {0}]
  %s3 = inlined_call_operand.vmem [shape: f32[8,1], index: 3, kind: output, shape index: {1}]
  %4 = xla_tuple %s2, %s3
  %s5 = sld [smem:[#allocation0]]
  $region26: #{dice_loss_pallas.1} parent=0
    _
  %s7 = ssub.s32 1, %s5
  %s8 = scalar_select 0, %s7, %s5
  // Predicated region
  $region2: #{dice_loss_pallas.1} parent=0 // pred_check
    _
  $region3: #{dice_loss_pallas.1} parent=0 // pred_check_branch
    %10 = sbr.rel (0) target = $region5
  $region4: #{dice_loss_pallas.1} parent=0 // pred_region
    _
  $region5: #{dice_loss_pallas.1} parent=0 // pred_fallthru
    _
  // Predicated region
  $region6: #{dice_loss_pallas.1} parent=0 // pred_check
    _
  $region7: #{dice_loss_pallas.1} parent=0 // pred_check_branch
    %12 = sbr.rel (0) target = $region9
  $region8: #{dice_loss_pallas.1} parent=0 // pred_region
    _
  $region9: #{dice_loss_pallas.1} parent=0 // pred_fallthru
    _
  %13 = vst [vmem:[#allocation2] sm:$0xff] 0.0
  %14 = vst [vmem:[#allocation3] sm:$0xff] 0.0
  %v15 = vld [vmem:[%s0] sm:$0xff]
  %v16 = vld [vmem:[%s1] sm:$0xff]
  %v17 = vmul.f32 %v15, 0.5
  %v18 = vtanh.pop %v17
  %v19 = vmul.f32 %v18, 0.5
  %v20 = vadd.f32 %v19, 0.5
  %v21 = vld [vmem:[#allocation2] sm:$0xff]
  %v22 = vmin.f32 %v20, %v16
  %v23 = vadd.f32 %v21, %v22
  %24 = vst [vmem:[#allocation2] sm:$0xff] %v23
  %v25 = vld [vmem:[#allocation3] sm:$0xff]
  %v26 = vadd.f32 %v20, %v16
  %v27 = vadd.f32 %v25, %v26
  %28 = vst [vmem:[#allocation3] sm:$0xff] %v27
  %v29 = vld [vmem:[%s0 + $0x8] sm:$0xff]
  %v30 = vld [vmem:[%s1 + $0x8] sm:$0xff]
  %v31 = vmul.f32 %v29, 0.5
  %v32 = vtanh.pop %v31
  %v33 = vmul.f32 %v32, 0.5
  %v34 = vadd.f32 %v33, 0.5
  %v35 = vld [vmem:[#allocation2] sm:$0xff]
  %v36 = vmin.f32 %v34, %v30
  %v37 = vadd.f32 %v35, %v36
  %38 = vst [vmem:[#allocation2] sm:$0xff] %v37
  %v39 = vld [vmem:[#allocation3] sm:$0xff]
  %v40 = vadd.f32 %v34, %v30
  %v41 = vadd.f32 %v39, %v40
  %42 = vst [vmem:[#allocation3] sm:$0xff] %v41
  %v43 = vld [vmem:[#allocation2] sm:$0xff]
  %44 = vadd.xlane.f32.xlu0 %v43
  %v45 = vpop.xlane.xlu0 %44
  %vm46 = vcmask 7168
  %47 = vst.msk [vmem:[%s2] sm:$0xff] %vm46, %v45
  %v48 = vld [vmem:[#allocation3] sm:$0xff]
  %49 = vadd.xlane.f32.xlu0 %v48
  %v50 = vpop.xlane.xlu0 %49
  %51 = vst.msk [vmem:[%s3] sm:$0xff] %vm46, %v50
  // Predicated region
  $region10: #{dice_loss_pallas.1} parent=0 // pred_check
    _
  $region11: #{dice_loss_pallas.1} parent=0 // pred_check_branch
    %53 = sbr.rel (0) target = $region13
  $region12: #{dice_loss_pallas.1} parent=0 // pred_region
    _
  $region13: #{dice_loss_pallas.1} parent=0 // pred_fallthru
    _
  // Predicated region
  $region14: #{dice_loss_pallas.1} parent=0 // pred_check
    _
  $region15: #{dice_loss_pallas.1} parent=0 // pred_check_branch
    %55 = sbr.rel (0) target = $region17
  $region16: #{dice_loss_pallas.1} parent=0 // pred_region
    _
  $region17: #{dice_loss_pallas.1} parent=0 // pred_fallthru
    _
  // Predicated region
  $region18: #{dice_loss_pallas.1} parent=0 // pred_check
    _
  $region19: #{dice_loss_pallas.1} parent=0 // pred_check_branch
    %57 = sbr.rel (0) target = $region21
  $region20: #{dice_loss_pallas.1} parent=0 // pred_region
    _
  $region21: #{dice_loss_pallas.1} parent=0 // pred_fallthru
    _
  // Predicated region
  $region22: #{dice_loss_pallas.1} parent=0 // pred_check
    _
  $region23: #{dice_loss_pallas.1} parent=0 // pred_check_branch
    %59 = sbr.rel (0) target = $region25
  $region24: #{dice_loss_pallas.1} parent=0 // pred_region
    _
  $region25: #{dice_loss_pallas.1} parent=0 // pred_fallthru
    _

</llo_original>
